<compile_context>
chip_gen: v5e
topology: v5e:2x2
jax: 0.10.0
libtpu: 0.0.40
codegen_flags: <defaults>
</compile_context>

<pallas_src>
import math
from functools import partial

import numpy as np
import jax
import jax.numpy as jnp
from jax.experimental import pallas as pl
from jax.experimental.pallas import tpu as pltpu

OUT_DIM = 224          # bilinearImputationNoDrop.outDim
BN_EPS = 1e-3
VMEM_LIMIT = 48 * 1024 * 1024


def _round_up(x, m):
    return ((x + m - 1) // m) * m


# ----------------------- Pallas kernels -----------------------

def _gemm_bn_act_kernel(a_ref, b_ref, s_ref, c_ref, o_ref, *, relu):
    """One (TM, K) x (K, TN) bf16 GEMM tile with fused scale/bias (+ReLU)."""
    acc = jnp.dot(a_ref[...], b_ref[...], preferred_element_type=jnp.float32)
    y = acc * s_ref[...] + c_ref[...]
    if relu:
        y = jnp.maximum(y, 0.0)
    o_ref[...] = y.astype(o_ref.dtype)


def matmul_fused(a, b, scale, bias, relu=False, out_dtype=jnp.float32):
    """(M,K) @ (K,N) * scale[N] + bias[N] (optional ReLU); bf16 MXU, f32 acc."""
    M, K = a.shape
    Kb, N = b.shape
    assert K == Kb
    a = a.astype(jnp.bfloat16)
    b = b.astype(jnp.bfloat16)

    # Pad the contraction dim only when it is not a multiple of 16 (conv1 K=9,
    # socialSig K=8); all other K in this network are already multiples of 16.
    if K % 16:
        Kp = _round_up(K, 16)
        a = jnp.pad(a, ((0, 0), (0, Kp - K)))
        b = jnp.pad(b, ((0, Kp - K), (0, 0)))
        K = Kp

    M0 = M
    if M < 8:                                   # tiny GEMMs (final Linear)
        a = jnp.pad(a, ((0, 8 - M), (0, 0)))
        M = 8

    TM = min(512, _round_up(M, 8))              # adaptive M tile, ragged edge ok
    TN = N if N <= 512 else 256                 # single N tile for this net
    s2 = scale.reshape(1, N).astype(jnp.float32)
    c2 = bias.reshape(1, N).astype(jnp.float32)

    grid = (pl.cdiv(M, TM), pl.cdiv(N, TN))
    out = pl.pallas_call(
        partial(_gemm_bn_act_kernel, relu=relu),
        out_shape=jax.ShapeDtypeStruct((M, N), out_dtype),
        grid=grid,
        in_specs=[
            pl.BlockSpec((TM, K), lambda i, j: (i, 0)),    # full-K single tile
            pl.BlockSpec((K, TN), lambda i, j: (0, j)),
            pl.BlockSpec((1, TN), lambda i, j: (0, j)),
            pl.BlockSpec((1, TN), lambda i, j: (0, j)),
        ],
        out_specs=pl.BlockSpec((TM, TN), lambda i, j: (i, j)),
        compiler_params=pltpu.CompilerParams(
            dimension_semantics=("parallel", "parallel"),
            vmem_limit_bytes=VMEM_LIMIT),
    )(a, b, s2, c2)
    if M0 != M:
        out = out[:M0]
    return out


def _avgpool_kernel(x_ref, o_ref, *, H, W):
    # 3x3 stride-1 avg pool (count_include_pad): 9 contiguous shifted windows.
    acc = x_ref[:, 0:H, 0:W, :].astype(jnp.float32)
    for kh in range(3):
        for kw in range(3):
            if kh == 0 and kw == 0:
                continue
            acc = acc + x_ref[:, kh:kh + H, kw:kw + W, :].astype(jnp.float32)
    o_ref[...] = (acc * (1.0 / 9.0)).astype(o_ref.dtype)


def _maxpool_kernel(ee_ref, eo_ref, oe_ref, oo_ref, o_ref, *, OH, OW):
    # 3x3 stride-2 max pool from 4 parity-split inputs (all slices contiguous).
    m = ee_ref[:, 0:OH, 0:OW, :]
    m = jnp.maximum(m, ee_ref[:, 0:OH, 1:OW + 1, :])
    m = jnp.maximum(m, ee_ref[:, 1:OH + 1, 0:OW, :])
    m = jnp.maximum(m, ee_ref[:, 1:OH + 1, 1:OW + 1, :])
    m = jnp.maximum(m, eo_ref[:, 0:OH, 0:OW, :])
    m = jnp.maximum(m, eo_ref[:, 1:OH + 1, 0:OW, :])
    m = jnp.maximum(m, oe_ref[:, 0:OH, 0:OW, :])
    m = jnp.maximum(m, oe_ref[:, 0:OH, 1:OW + 1, :])
    m = jnp.maximum(m, oo_ref[:, 0:OH, 0:OW, :])
    o_ref[...] = m


def _gap_kernel(x_ref, o_ref, *, inv):
    x = x_ref[...].astype(jnp.float32)
    o_ref[...] = (jnp.sum(x, axis=(1, 2)) * inv)[:, None, :]


def _pool_ctile(C):
    return 256 if C % 256 == 0 else C


# ----------------------- conv / pool wrappers -----------------------

def conv2d_fused(x, p, relu=True):
    """NHWC conv (no conv bias) via im2col + Pallas GEMM, BN/ReLU fused."""
    KH, KW = p["ksize"]
    sh, sw = p["stride"]
    ph, pw = p["padding"]
    N, H, W, C = x.shape
    if ph or pw:
        x = jnp.pad(x, ((0, 0), (ph, ph), (pw, pw), (0, 0)))
    Hp, Wp = H + 2 * ph, W + 2 * pw
    OH = (Hp - KH) // sh + 1
    OW = (Wp - KW) // sw + 1
    if KH == 1 and KW == 1 and sh == 1 and sw == 1:
        A = x.reshape(N * OH * OW, C)            # 1x1 conv: no patch duplication
    else:
        # TODO(synk): im2col still materialized in XLA (bf16); fully implicit
        # im2col would need manual-DMA halo blocks.
        cols = [x[:, kh:kh + sh * (OH - 1) + 1:sh,
                  kw:kw + sw * (OW - 1) + 1:sw, :]
                for kh in range(KH) for kw in range(KW)]
        A = jnp.concatenate(cols, axis=-1).reshape(N * OH * OW, KH * KW * C)
    out = matmul_fused(A, p["w"], p["scale"], p["bias"],
                       relu=relu, out_dtype=jnp.bfloat16)
    return out.reshape(N, OH, OW, -1)


def avg_pool_3x3_s1_p1(x):
    # F.avg_pool2d(x, 3, stride=1, padding=1), count_include_pad=True (/9)
    N, H, W, C = x.shape
    xp = jnp.pad(x, ((0, 0), (1, 1), (1, 1), (0, 0)))
    TC = _pool_ctile(C)
    return pl.pallas_call(
        partial(_avgpool_kernel, H=H, W=W),
        out_shape=jax.ShapeDtypeStruct((N, H, W, C), x.dtype),
        grid=(N, C // TC),
        in_specs=[pl.BlockSpec((1, H + 2, W + 2, TC), lambda n, c: (n, 0, 0, c))],
        out_specs=pl.BlockSpec((1, H, W, TC), lambda n, c: (n, 0, 0, c)),
        compiler_params=pltpu.CompilerParams(
            dimension_semantics=("parallel", "parallel"),
            vmem_limit_bytes=VMEM_LIMIT),
    )(xp)


def max_pool_3x3_s2(x):
    N, H, W, C = x.shape
    OH = (H - 3) // 2 + 1
    OW = (W - 3) // 2 + 1
    # Parity split in XLA so all in-kernel window slices are contiguous.
    xee = x[:, 0::2, 0::2, :]
    xeo = x[:, 0::2, 1::2, :]
    xoe = x[:, 1::2, 0::2, :]
    xoo = x[:, 1::2, 1::2, :]
    He, We = xee.shape[1], xee.shape[2]
    Ho, Wo = xoo.shape[1], xoo.shape[2]
    TC = _pool_ctile(C)
    return pl.pallas_call(
        partial(_maxpool_kernel, OH=OH, OW=OW),
        out_shape=jax.ShapeDtypeStruct((N, OH, OW, C), x.dtype),
        grid=(N, C // TC),
        in_specs=[
            pl.BlockSpec((1, He, We, TC), lambda n, c: (n, 0, 0, c)),
            pl.BlockSpec((1, He, Wo, TC), lambda n, c: (n, 0, 0, c)),
            pl.BlockSpec((1, Ho, We, TC), lambda n, c: (n, 0, 0, c)),
            pl.BlockSpec((1, Ho, Wo, TC), lambda n, c: (n, 0, 0, c)),
        ],
        out_specs=pl.BlockSpec((1, OH, OW, TC), lambda n, c: (n, 0, 0, c)),
        compiler_params=pltpu.CompilerParams(
            dimension_semantics=("parallel", "parallel"),
            vmem_limit_bytes=VMEM_LIMIT),
    )(xee, xeo, xoe, xoo)


def global_avg_pool(x):
    # AdaptiveAvgPool2d((1, 1))
    N, H, W, C = x.shape
    TC = _pool_ctile(C)
    out = pl.pallas_call(
        partial(_gap_kernel, inv=1.0 / (H * W)),
        out_shape=jax.ShapeDtypeStruct((N, 1, C), jnp.float32),
        grid=(N, C // TC),
        in_specs=[pl.BlockSpec((1, H, W, TC), lambda n, c: (n, 0, 0, c))],
        out_specs=pl.BlockSpec((1, 1, TC), lambda n, c: (n, 0, c)),
        compiler_params=pltpu.CompilerParams(
            dimension_semantics=("parallel", "parallel"),
            vmem_limit_bytes=VMEM_LIMIT),
    )(x)
    return out.reshape(N, C)


# ----------------------- deterministic parameters -----------------------

class ParamGen:
    def __init__(self, key):
        self.key = key
        self.count = 0

    def normal(self, shape, std):
        self.count += 1
        k = jax.random.fold_in(self.key, self.count)
        return jax.random.normal(k, shape, jnp.float32) * std


def make_basic_conv(pg, in_c, out_c, ksize, stride=(1, 1), padding=(0, 0)):
    kh, kw = ksize
    fan_in = in_c * kh * kw
    w = pg.normal((kh, kw, in_c, out_c), std=math.sqrt(2.0 / fan_in))
    # BatchNorm2d(eps=0.001) eval mode with default init stats folded in.
    gamma = jnp.ones((out_c,), jnp.float32)
    beta = jnp.zeros((out_c,), jnp.float32)
    mean = jnp.zeros((out_c,), jnp.float32)
    var = jnp.ones((out_c,), jnp.float32)
    scale = gamma / jnp.sqrt(var + BN_EPS)
    bias = beta - mean * scale
    return dict(w=w.reshape(kh * kw * in_c, out_c).astype(jnp.bfloat16),
                ksize=ksize, stride=stride, padding=padding,
                scale=scale, bias=bias)


def apply_basic_conv(p, x, relu=True):
    return conv2d_fused(x, p, relu)


def make_inception_a(pg, in_c, pool_features):
    return dict(
        b1=make_basic_conv(pg, in_c, 64, (1, 1)),
        b5_1=make_basic_conv(pg, in_c, 48, (1, 1)),
        b5_2=make_basic_conv(pg, 48, 64, (5, 5), padding=(2, 2)),
        b3d_1=make_basic_conv(pg, in_c, 64, (1, 1)),
        b3d_2=make_basic_conv(pg, 64, 96, (3, 3), padding=(1, 1)),
        b3d_3=make_basic_conv(pg, 96, 96, (3, 3), padding=(1, 1)),
        bp=make_basic_conv(pg, in_c, pool_features, (1, 1)),
    )


def apply_inception_a(p, x):
    b1 = apply_basic_conv(p["b1"], x)
    b5 = apply_basic_conv(p["b5_2"], apply_basic_conv(p["b5_1"], x))
    b3 = apply_basic_conv(p["b3d_3"], apply_basic_conv(
        p["b3d_2"], apply_basic_conv(p["b3d_1"], x)))
    bp = apply_basic_conv(p["bp"], avg_pool_3x3_s1_p1(x))
    return jnp.concatenate([b1, b5, b3, bp], axis=-1)


def make_inception_b(pg, in_c):
    return dict(
        b3=make_basic_conv(pg, in_c, 384, (3, 3), stride=(2, 2)),
        b3d_1=make_basic_conv(pg, in_c, 64, (1, 1)),
        b3d_2=make_basic_conv(pg, 64, 96, (3, 3), padding=(1, 1)),
        b3d_3=make_basic_conv(pg, 96, 96, (3, 3), stride=(2, 2)),
    )


def apply_inception_b(p, x):
    b3 = apply_basic_conv(p["b3"], x)
    b3d = apply_basic_conv(p["b3d_3"], apply_basic_conv(
        p["b3d_2"], apply_basic_conv(p["b3d_1"], x)))
    bp = max_pool_3x3_s2(x)
    return jnp.concatenate([b3, b3d, bp], axis=-1)


def make_inception_c(pg, in_c, c7):
    return dict(
        b1=make_basic_conv(pg, in_c, 192, (1, 1)),
        b7_1=make_basic_conv(pg, in_c, c7, (1, 1)),
        b7_2=make_basic_conv(pg, c7, c7, (1, 7), padding=(0, 3)),
        b7_3=make_basic_conv(pg, c7, 192, (7, 1), padding=(3, 0)),
        b7d_1=make_basic_conv(pg, in_c, c7, (1, 1)),
        b7d_2=make_basic_conv(pg, c7, c7, (7, 1), padding=(3, 0)),
        b7d_3=make_basic_conv(pg, c7, c7, (1, 7), padding=(0, 3)),
        b7d_4=make_basic_conv(pg, c7, c7, (7, 1), padding=(3, 0)),
        b7d_5=make_basic_conv(pg, c7, 192, (1, 7), padding=(0, 3)),
        bp=make_basic_conv(pg, in_c, 192, (1, 1)),
    )


def apply_inception_c(p, x):
    b1 = apply_basic_conv(p["b1"], x)
    b7 = apply_basic_conv(p["b7_3"], apply_basic_conv(
        p["b7_2"], apply_basic_conv(p["b7_1"], x)))
    y = apply_basic_conv(p["b7d_1"], x)
    for name in ("b7d_2", "b7d_3", "b7d_4", "b7d_5"):
        y = apply_basic_conv(p[name], y)
    bp = apply_basic_conv(p["bp"], avg_pool_3x3_s1_p1(x))
    return jnp.concatenate([b1, b7, y, bp], axis=-1)


def make_inception_d(pg, in_c):
    return dict(
        b3_1=make_basic_conv(pg, in_c, 192, (1, 1)),
        b3_2=make_basic_conv(pg, 192, 320, (3, 3), stride=(2, 2)),
        b7_1=make_basic_conv(pg, in_c, 192, (1, 1)),
        b7_2=make_basic_conv(pg, 192, 192, (1, 7), padding=(0, 3)),
        b7_3=make_basic_conv(pg, 192, 192, (7, 1), padding=(3, 0)),
        b7_4=make_basic_conv(pg, 192, 192, (3, 3), stride=(2, 2)),
    )


def apply_inception_d(p, x):
    b3 = apply_basic_conv(p["b3_2"], apply_basic_conv(p["b3_1"], x))
    y = apply_basic_conv(p["b7_1"], x)
    for name in ("b7_2", "b7_3", "b7_4"):
        y = apply_basic_conv(p[name], y)
    bp = max_pool_3x3_s2(x)
    return jnp.concatenate([b3, y, bp], axis=-1)


def make_inception_e(pg, in_c):
    return dict(
        b1=make_basic_conv(pg, in_c, 320, (1, 1)),
        b3_1=make_basic_conv(pg, in_c, 384, (1, 1)),
        b3_2a=make_basic_conv(pg, 384, 384, (1, 3), padding=(0, 1)),
        b3_2b=make_basic_conv(pg, 384, 384, (3, 1), padding=(1, 0)),
        b3d_1=make_basic_conv(pg, in_c, 448, (1, 1)),
        b3d_2=make_basic_conv(pg, 448, 384, (3, 3), padding=(1, 1)),
        b3d_3a=make_basic_conv(pg, 384, 384, (1, 3), padding=(0, 1)),
        b3d_3b=make_basic_conv(pg, 384, 384, (3, 1), padding=(1, 0)),
        bp=make_basic_conv(pg, in_c, 192, (1, 1)),
    )


def apply_inception_e(p, x):
    b1 = apply_basic_conv(p["b1"], x)
    b3 = apply_basic_conv(p["b3_1"], x)
    b3 = jnp.concatenate([apply_basic_conv(p["b3_2a"], b3),
                          apply_basic_conv(p["b3_2b"], b3)], axis=-1)
    b3d = apply_basic_conv(p["b3d_2"], apply_basic_conv(p["b3d_1"], x))
    b3d = jnp.concatenate([apply_basic_conv(p["b3d_3a"], b3d),
                           apply_basic_conv(p["b3d_3b"], b3d)], axis=-1)
    bp = apply_basic_conv(p["bp"], avg_pool_3x3_s1_p1(x))
    return jnp.concatenate([b1, b3, b3d, bp], axis=-1)


# ----------------------- SocialSig (bilinearImputationNoDrop) -----------------------

def bilinear_matrix(out_size, in_size):
    """Row-interpolation matrix matching F.interpolate(mode='bilinear', align_corners=False)."""
    o = np.arange(out_size, dtype=np.float64)
    src = (o + 0.5) * (in_size / out_size) - 0.5
    src = np.maximum(src, 0.0)
    i0 = np.minimum(np.floor(src).astype(np.int64), in_size - 1)
    i1 = np.minimum(i0 + 1, in_size - 1)
    w = src - i0
    M = np.zeros((out_size, in_size), np.float64)
    M[np.arange(out_size), i0] += 1.0 - w
    M[np.arange(out_size), i1] += w
    return jnp.asarray(M, jnp.float32)


def social_sig(p, X):
    B, F = X.shape
    in_dim = p["in_dim"]
    # TODO(synk): construct_noOverlap_indices() source is not provided; we model it
    # as a per-row gather of features ordered by W (argsort).
    perm = jnp.argsort(p["W_sig"])
    taken = X[:, perm]
    target = in_dim * in_dim
    padded = jnp.pad(taken, ((0, 0), (0, target - F)))      # F.pad(..., value=0)
    img = padded.reshape(B, in_dim, in_dim)                  # (B, 1, inDim, inDim) squeezed
    L = p["L"]                                               # (224, inDim)
    ones = jnp.ones((OUT_DIM,), jnp.float32)
    zeros = jnp.zeros((OUT_DIM,), jnp.float32)
    # columns: tmp[b,i,o2] = sum_j img[b,i,j] * L[o2,j]
    tmp = matmul_fused(img.reshape(B * in_dim, in_dim), L.T, ones, zeros,
                       relu=False, out_dtype=jnp.bfloat16).reshape(B, in_dim, OUT_DIM)
    # rows: out[b,o1,o2] = sum_i L[o1,i] * tmp[b,i,o2]
    tmp_t = tmp.transpose(0, 2, 1).reshape(B * OUT_DIM, in_dim)
    out = matmul_fused(tmp_t, L.T, ones, zeros, relu=False, out_dtype=jnp.bfloat16)
    out = out.reshape(B, OUT_DIM, OUT_DIM).transpose(0, 2, 1)
    return out[..., None]                                    # NHWC, C=1, bf16


# ----------------------- full model -----------------------

def make_params(key, n_features):
    pg = ParamGen(key)
    p = {}
    p["W_sig"] = jnp.asarray(np.arange(n_features) * 0.001, jnp.float32)
    p["in_dim"] = math.ceil(math.sqrt(n_features))
    p["L"] = bilinear_matrix(OUT_DIM, p["in_dim"])
    p["conv1"] = make_basic_conv(pg, 1, 32, (3, 3), stride=(2, 2))   # conv1 + bn1
    p["c2a"] = make_basic_conv(pg, 32, 32, (3, 3))
    p["c2b"] = make_basic_conv(pg, 32, 64, (3, 3), padding=(1, 1))
    p["c3b"] = make_basic_conv(pg, 64, 80, (1, 1))
    p["c4a"] = make_basic_conv(pg, 80, 192, (3, 3))
    p["m5b"] = make_inception_a(pg, 192, 32)
    p["m5c"] = make_inception_a(pg, 256, 64)
    p["m5d"] = make_inception_a(pg, 288, 64)
    p["m6a"] = make_inception_b(pg, 288)
    p["m6b"] = make_inception_c(pg, 768, 128)
    p["m6c"] = make_inception_c(pg, 768, 160)
    p["m6d"] = make_inception_c(pg, 768, 160)
    p["m6e"] = make_inception_c(pg, 768, 192)
    p["m7a"] = make_inception_d(pg, 768)
    p["m7b"] = make_inception_e(pg, 1280)
    p["m7c"] = make_inception_e(pg, 2048)
    p["lin_w"] = pg.normal((2048, 1), std=math.sqrt(1.0 / 2048)).astype(jnp.bfloat16)
    p["lin_b"] = jnp.zeros((1,), jnp.float32)
    return p


def forward(p, X):
    out = social_sig(p, X)                                 # (B,224,224,1) bf16
    out = apply_basic_conv(p["conv1"], out, relu=False)    # conv1 -> bn1 (no ReLU)
    out = apply_basic_conv(p["c2a"], out)                  # Conv2d_2a_3x3
    out = apply_basic_conv(p["c2b"], out)                  # Conv2d_2b_3x3
    out = max_pool_3x3_s2(out)                             # maxpool1
    out = apply_basic_conv(p["c3b"], out)                  # Conv2d_3b_1x1
    out = apply_basic_conv(p["c4a"], out)                  # Conv2d_4a_3x3
    out = apply_inception_a(p["m5b"], out)
    out = apply_inception_a(p["m5c"], out)
    out = apply_inception_a(p["m5d"], out)
    out = apply_inception_b(p["m6a"], out)
    out = apply_inception_c(p["m6b"], out)
    out = apply_inception_c(p["m6c"], out)
    out = apply_inception_c(p["m6d"], out)
    out = apply_inception_c(p["m6e"], out)
    out = apply_inception_d(p["m7a"], out)
    out = apply_inception_e(p["m7b"], out)
    out = apply_inception_e(p["m7c"], out)
    out = global_avg_pool(out)                             # avgpool -> (B,2048) f32
    # dropout: eval mode -> identity
    out = matmul_fused(out, p["lin_w"], jnp.ones((1,), jnp.float32),
                       p["lin_b"], relu=False, out_dtype=jnp.float32)  # Linear(2048,1)
    return out


if __name__ == "__main__":
    key = jax.random.PRNGKey(0)
    B, F = 2, 60                        # X: (batch, n_features); inDim = ceil(sqrt(60)) = 8
    X = jax.random.normal(jax.random.fold_in(key, 12345), (B, F), jnp.float32)
    params = make_params(key, F)
    y = forward(params, X)
    y = jax.block_until_ready(y)
    assert y.shape == (B, 1) and bool(jnp.all(jnp.isfinite(y)))
    print("KERNEL_OK")
</pallas_src>

<mosaic_0001>
module attributes {stable_mosaic.version = 11 : i64} {
  func.func @_gemm_bn_act_kernel(%arg0: i32, %arg1: i32, %arg2: memref<16x16xbf16, #tpu.memory_space<vmem>>, %arg3: memref<16x224xbf16, #tpu.memory_space<vmem>>, %arg4: memref<1x224xf32, #tpu.memory_space<vmem>>, %arg5: memref<1x224xf32, #tpu.memory_space<vmem>>, %arg6: memref<16x224xbf16, #tpu.memory_space<vmem>>) attributes {dimension_semantics = [#tpu.dimension_semantics<parallel>, #tpu.dimension_semantics<parallel>], iteration_bounds = array<i64: 1, 1>, scalar_prefetch = 0 : i64, scratch_operands = 0 : i64, tpu.core_type = #tpu.core_type<tc>, window_params = [{transform_indices = @transform_0, window_bounds = array<i64: 16, 16>}, {transform_indices = @transform_1, window_bounds = array<i64: 16, 224>}, {transform_indices = @transform_2, window_bounds = array<i64: 1, 224>}, {transform_indices = @transform_3, window_bounds = array<i64: 1, 224>}, {transform_indices = @transform_4, window_bounds = array<i64: 16, 224>}]} {
    %c0 = arith.constant 0 : index
    %c0_0 = arith.constant 0 : index
    %0 = vector.load %arg2[%c0, %c0_0] : memref<16x16xbf16, #tpu.memory_space<vmem>>, vector<16x16xbf16>
    %c0_1 = arith.constant 0 : index
    %c0_2 = arith.constant 0 : index
    %1 = vector.load %arg3[%c0_1, %c0_2] : memref<16x224xbf16, #tpu.memory_space<vmem>>, vector<16x224xbf16>
    %cst = arith.constant dense<0.000000e+00> : vector<16x224xf32>
    %2 = tpu.matmul %0, %1, %cst {dimension_numbers = #tpu.dot_dimension_numbers<[1], [0], [0], [1], [0, 0, 1, 1], [], []>} : vector<16x16xbf16>, vector<16x224xbf16>, vector<16x224xf32> -> vector<16x224xf32>
    %c0_3 = arith.constant 0 : index
    %c0_4 = arith.constant 0 : index
    %3 = vector.load %arg4[%c0_3, %c0_4] : memref<1x224xf32, #tpu.memory_space<vmem>>, vector<1x224xf32>
    %4 = vector.broadcast %3 : vector<1x224xf32> to vector<16x224xf32>
    %5 = arith.mulf %2, %4 : vector<16x224xf32>
    %c0_5 = arith.constant 0 : index
    %c0_6 = arith.constant 0 : index
    %6 = vector.load %arg5[%c0_5, %c0_6] : memref<1x224xf32, #tpu.memory_space<vmem>>, vector<1x224xf32>
    %7 = vector.broadcast %6 : vector<1x224xf32> to vector<16x224xf32>
    %8 = arith.addf %5, %7 : vector<16x224xf32>
    %9 = arith.truncf %8 : vector<16x224xf32> to vector<16x224xbf16>
    %c0_7 = arith.constant 0 : index
    %c0_8 = arith.constant 0 : index
    %10 = vector.load %arg6[%c0_7, %c0_8] : memref<16x224xbf16, #tpu.memory_space<vmem>>, vector<16x224xbf16>
    tpu.vector_store %arg6[%c0_7, %c0_8], %9 {strides = array<i32>} : memref<16x224xbf16, #tpu.memory_space<vmem>>, vector<16x224xbf16>,
    return
  }
  func.func @transform_0(%arg0: i32, %arg1: i32) -> (i32, i32) {
    %c0_i32 = arith.constant 0 : i32
    %c0_i32_0 = arith.constant 0 : i32
    return %arg0, %c0_i32 : i32, i32
  }
  func.func @transform_1(%arg0: i32, %arg1: i32) -> (i32, i32) {
    %c0_i32 = arith.constant 0 : i32
    %c0_i32_0 = arith.constant 0 : i32
    return %c0_i32, %arg1 : i32, i32
  }
  func.func @transform_2(%arg0: i32, %arg1: i32) -> (i32, i32) {
    %c0_i32 = arith.constant 0 : i32
    %c0_i32_0 = arith.constant 0 : i32
    return %c0_i32, %arg1 : i32, i32
  }
  func.func @transform_3(%arg0: i32, %arg1: i32) -> (i32, i32) {
    %c0_i32 = arith.constant 0 : i32
    %c0_i32_0 = arith.constant 0 : i32
    return %c0_i32, %arg1 : i32, i32
  }
  func.func @transform_4(%arg0: i32, %arg1: i32) -> (i32, i32) {
    %c0_i32 = arith.constant 0 : i32
    return %arg0, %arg1 : i32, i32
  }
}

</mosaic_0001>

<llo_original>
// kernel: tpu_custom_call.1
$region0: #{tpu_custom_call.1}
  #allocation0 [shape = 'u32[]', space=smem, size = 0x4, offset = 0x4, fixed_abs, tag = 'smem constant byte address 0x4 - core index']
  #allocation1 [shape = 'u32[72,128]{1,0:T(1,128)}', space=vmem, size = 0x9000, scoped, tag = 'internal scratch']
  %s0 = inlined_call_operand.hbm [shape: bf16[16,16], index: 0, kind: input, shape index: {}]
  %s1 = inlined_call_operand.hbm [shape: bf16[16,224], index: 1, kind: input, shape index: {}]
  %s2 = inlined_call_operand.hbm [shape: f32[1,224], index: 2, kind: input, shape index: {}]
  %s3 = inlined_call_operand.vmem [shape: f32[1,224], index: 3, kind: input, shape index: {}]
  %s4 = inlined_call_operand.hbm [shape: bf16[16,224], index: 4, kind: output, shape index: {}]
  %s5 = sld [smem:[#allocation0]]
  $region38: #{tpu_custom_call.1} parent=0
    _
  %s7 = ssub.s32 1, %s5
  %s8 = scalar_select 0, %s7, %s5
  $region1: #{tpu_custom_call.1} parent=0
    #allocation2 [shape = 'u8[4096]{0}', space=vmem, size = 0x1000, scoped, tag = 'input window, operand 0, single buffered']
    #allocation3 [shape = 's32[1]{0}', space=sflag, size = 0x4, scoped, tag = 'scoped memory for tpu_custom_call.1']
    #allocation4 [shape = 's32[1]{0}', space=sflag, size = 0x4, scoped, tag = 'scoped memory for tpu_custom_call.1']
    #allocation5 [shape = 'u8[8192]{0}', space=vmem, size = 0x2000, scoped, tag = 'input window, operand 1, single buffered']
    #allocation6 [shape = 's32[1]{0}', space=sflag, size = 0x4, scoped, tag = 'scoped memory for tpu_custom_call.1']
    #allocation7 [shape = 'u8[1024]{0}', space=vmem, size = 0x400, scoped, tag = 'input window, operand 2, single buffered']
    #allocation8 [shape = 'u8[8192]{0}', space=vmem, size = 0x2000, scoped, tag = 'output window, operand 0, single buffered']
    %9 = vsyncpa [#allocation3], 0
    %10 = vsyncpa [#allocation6], 0
    %11 = vsyncpa [#allocation4], 0
    // Predicated region
    $region2: #{tpu_custom_call.1} parent=1 // pred_check
      _
    $region3: #{tpu_custom_call.1} parent=1 // pred_check_branch
      %13 = sbr.rel (0) target = $region5
    $region4: #{tpu_custom_call.1} parent=1 // pred_region
      %15 = vsyncadd [#allocation3], 0
      %s16 = sshll.u32 %s0, 4
      %s17 = int_to_ptr.hbm [resolvable:$true] %s16
      %s18 = sshll.u32 [#allocation2], 4
      %s19 = int_to_ptr.vmem [resolvable:$true] %s18
      %24 = dma.hbm_to_vmem [thread:$0]  %s17, 128, %s19, [#allocation3], 64, 64, 4
    $region5: #{tpu_custom_call.1} parent=1 // pred_fallthru
      _
    // Predicated region
    $region6: #{tpu_custom_call.1} parent=1 // pred_check
      _
    $region7: #{tpu_custom_call.1} parent=1 // pred_check_branch
      %26 = sbr.rel (0) target = $region9
    $region8: #{tpu_custom_call.1} parent=1 // pred_region
      %28 = vsyncadd [#allocation6], 0
      %s29 = sshll.u32 %s1, 4
      %s30 = int_to_ptr.hbm [resolvable:$true] %s29
      %s31 = sshll.u32 [#allocation5], 4
      %s32 = int_to_ptr.vmem [resolvable:$true] %s31
      %37 = dma.hbm_to_vmem [thread:$0]  %s30, 256, %s32, [#allocation6], 128, 128, 8
    $region9: #{tpu_custom_call.1} parent=1 // pred_fallthru
      _
    // Predicated region
    $region10: #{tpu_custom_call.1} parent=1 // pred_check
      _
    $region11: #{tpu_custom_call.1} parent=1 // pred_check_branch
      %39 = sbr.rel (0) target = $region13
    $region12: #{tpu_custom_call.1} parent=1 // pred_region
      %41 = vsyncadd [#allocation6], 0
      %s43 = sshll.u32 %s2, 4
      %s44 = int_to_ptr.hbm [resolvable:$true] %s43
      %s45 = sshll.u32 [#allocation7], 4
      %s46 = int_to_ptr.vmem [resolvable:$true] %s45
      %48 = dma.hbm_to_vmem [thread:$0]  %s44, 32, %s46, [#allocation6]
    $region13: #{tpu_custom_call.1} parent=1 // pred_fallthru
      _
    // Predicated region
    $region14: #{tpu_custom_call.1} parent=1 // pred_check
      _
    $region15: #{tpu_custom_call.1} parent=1 // pred_check_branch
      %50 = sbr.rel (0) target = $region17
    $region16: #{tpu_custom_call.1} parent=1 // pred_region
      _
    $region17: #{tpu_custom_call.1} parent=1 // pred_fallthru
      _
    // Predicated region
    $region18: #{tpu_custom_call.1} parent=1 // pred_check
      _
    $region19: #{tpu_custom_call.1} parent=1 // pred_check_branch
      %52 = sbr.rel (0) target = $region21
    $region20: #{tpu_custom_call.1} parent=1 // pred_region
      %54 = dma.done [#allocation3], 128
    $region21: #{tpu_custom_call.1} parent=1 // pred_fallthru
      _
    // Predicated region
    $region22: #{tpu_custom_call.1} parent=1 // pred_check
      _
    $region23: #{tpu_custom_call.1} parent=1 // pred_check_branch
      %56 = sbr.rel (0) target = $region25
    $region24: #{tpu_custom_call.1} parent=1 // pred_region
      %58 = dma.done [#allocation6], 256
    $region25: #{tpu_custom_call.1} parent=1 // pred_fallthru
      _
    // Predicated region
    $region26: #{tpu_custom_call.1} parent=1 // pred_check
      _
    $region27: #{tpu_custom_call.1} parent=1 // pred_check_branch
      %60 = sbr.rel (0) target = $region29
    $region28: #{tpu_custom_call.1} parent=1 // pred_region
      %62 = dma.done [#allocation6], 32
    $region29: #{tpu_custom_call.1} parent=1 // pred_fallthru
      _
    %v64 = vld [vmem:[#allocation2] sm:$0xf]
    %v65 = vld [vmem:[#allocation2 + $0x4] sm:$0xf]
    %v66 = vld [vmem:[#allocation5] sm:$0xff]
    %v67 = vld [vmem:[#allocation5 + $0x8] sm:$0xff]
    %v70 = vunpack.c.l.b16 %v64
    %v71 = vunpack.c.l.b16 %v65
    %v72 = vpack.c.b16 %v71, %v70
    %v75 = vunpack.c.l.b16 %v66
    %v76 = vunpack.c.h.b16 %v66
    %v77 = vunpack.c.l.b16 %v67
    %v78 = vunpack.c.h.b16 %v67
    %v79 = vpack.c.b16 %v77, %v75
    %v80 = vpack.c.b16 %v78, %v76
    %vm83 = vcmask 130048
    %v85 = vsel %vm83, %v72, 0
    %87 = vmatpush.bf16.msra.mxu0 0
    %88 = vmatpush.bf16.msra.mxu0 0
    %89 = vmatpush.bf16.msra.mxu0 0
    %90 = vmatpush.bf16.msra.mxu0 0
    %91 = vmatpush.bf16.msra.mxu0 0
    %92 = vmatpush.bf16.msra.mxu0 0
    %93 = vmatpush.bf16.msra.mxu0 0
    %94 = vmatpush.bf16.msra.mxu0 %v79
    %95 = vmatmul.bf16.gmra.mxu0 %v85
    %v96 = vpop.f32.mrf.mxu0
    %v97 = vadd.f32 0.0, %v96
    %v98 = vpop.f32.mrf.mxu0
    %v99 = vadd.f32 0.0, %v98
    %100 = vdwg.mxu0
    %101 = vmatpush.bf16.msra.mxu0 0
    %102 = vmatpush.bf16.msra.mxu0 0
    %103 = vmatpush.bf16.msra.mxu0 0
    %104 = vmatpush.bf16.msra.mxu0 0
    %105 = vmatpush.bf16.msra.mxu0 0
    %106 = vmatpush.bf16.msra.mxu0 0
    %107 = vmatpush.bf16.msra.mxu0 0
    %108 = vmatpush.bf16.msra.mxu0 %v80
    %109 = vmatmul.bf16.gmra.mxu0 %v85
    %v110 = vpop.f32.mrf.mxu0
    %v111 = vadd.f32 0.0, %v110
    %v112 = vpop.f32.mrf.mxu0
    %v113 = vadd.f32 0.0, %v112
    %114 = vdwg.mxu0
    %v115 = vld [vmem:[#allocation7] sm:$0x3]
    %v117 = vperm.slane %v115, 0
    %v118 = vperm.slane %v115, 1
    %v121 = vmul.f32 %v97, %v117
    %v122 = vmul.f32 %v111, %v118
    %v123 = vmul.f32 %v99, %v117
    %v124 = vmul.f32 %v113, %v118
    %v125 = vld [vmem:[%s3] sm:$0x3]
    %v127 = vperm.slane %v125, 0
    %v128 = vperm.slane %v125, 1
    %v131 = vadd.f32 %v121, %v127
    %v132 = vadd.f32 %v122, %v128
    %v133 = vadd.f32 %v123, %v127
    %v134 = vadd.f32 %v124, %v128
    %v135 = vpack.c.bf16 %v132, %v131
    %v136 = vpack.c.bf16 %v134, %v133
    %vm137 = vcmask 1043456
    %vm138 = vcmask 785412
    %vm139 = vmor %vm138, %vm137
    %140 = vst.msk [vmem:[#allocation8] sm:$0xff] %vm139, %v135
    %141 = vst.msk [vmem:[#allocation8 + $0x8] sm:$0xff] %vm139, %v136
    // Predicated region
    $region30: #{tpu_custom_call.1} parent=1 // pred_check
      _
    $region31: #{tpu_custom_call.1} parent=1 // pred_check_branch
      %143 = sbr.rel (0) target = $region33
    $region32: #{tpu_custom_call.1} parent=1 // pred_region
      %145 = vsyncadd [#allocation4], 0
      %s146 = sshll.u32 [#allocation8], 4
      %s147 = int_to_ptr.vmem [resolvable:$true] %s146
      %s148 = sshll.u32 %s4, 4
      %s149 = int_to_ptr.hbm [resolvable:$true] %s148
      %154 = dma.vmem_to_hbm [thread:$0]  %s147, 256, %s149, [#allocation4], 128, 128, 8
    $region33: #{tpu_custom_call.1} parent=1 // pred_fallthru
      _
    // Predicated region
    $region34: #{tpu_custom_call.1} parent=1 // pred_check
      _
    $region35: #{tpu_custom_call.1} parent=1 // pred_check_branch
      %156 = sbr.rel (0) target = $region37
    $region36: #{tpu_custom_call.1} parent=1 // pred_region
      %158 = dma.done [#allocation4], 256
    $region37: #{tpu_custom_call.1} parent=1 // pred_fallthru
      _
    %159 = vsyncpa [#allocation3], 1
    %160 = vsyncpa [#allocation6], 1
    %161 = vsyncpa [#allocation4], 1

</llo_original>
